<compile_context>
chip_gen: v6e
topology: v6e:2x2x1
jax: 0.10.0
libtpu: 0.0.40
codegen_flags: <defaults>
</compile_context>

<pallas_src>
import functools

import jax
import jax.numpy as jnp
import numpy as np
from jax import lax
from jax.experimental import pallas as pl
from jax.experimental.pallas import tpu as pltpu


def _round_up(x, m):
    return ((x + m - 1) // m) * m


def _embedding_kernel(ids_ref, wv_hbm, wp_ref, w0_ref, b0_ref, w1_ref, b1_ref,
                      out_ref, gbuf, gsem, *, h_pad, tm):
    """Gather + proj + 2-layer highway for one tm-row tile of token rows.

    ids_ref : SMEM (N_pad,) int32, scalar-prefetched token ids.
    wv_hbm  : HBM  (V, D_pad) f32 padded embedding table (memory_space=ANY).
    wp_ref  : VMEM (D_pad, H_pad) projection weight (compute dtype).
    w*/b*   : VMEM fused highway weights (H_pad, 2*H_pad) / biases (1, 2*H_pad);
              columns [0:h_pad) = gate, [h_pad:2*h_pad) = transform.
    gbuf    : VMEM (tm, D_pad) f32 gather scratch.
    gsem    : DMA semaphore (1,).
    """
    i = pl.program_id(0)
    base = i * tm

    # ---- in-kernel row gather: one DMA per token row, HBM table -> VMEM ----
    def issue_row(r, carry):
        row = ids_ref[base + r]
        pltpu.make_async_copy(wv_hbm.at[pl.ds(row, 1)],
                              gbuf.at[pl.ds(r, 1)],
                              gsem.at[0]).start()
        return carry

    lax.fori_loop(0, tm, issue_row, 0)

    # Single aggregate wait: the descriptor only supplies the byte count
    # (= whole gbuf = sum of the tm per-row copies signalling gsem[0]).
    pltpu.make_async_copy(gbuf, gbuf, gsem.at[0]).wait()

    cdt = wp_ref.dtype

    # projection: (tm, D_pad) @ (D_pad, H_pad) -> f32 accumulation.
    x = jnp.dot(gbuf[...].astype(cdt), wp_ref[...],
                preferred_element_type=jnp.float32)

    # two highway layers, each a single fused matmul (static unroll).
    for w_ref, b_ref in ((w0_ref, b0_ref), (w1_ref, b1_ref)):
        gt = jnp.dot(x.astype(cdt), w_ref[...],
                     preferred_element_type=jnp.float32) + b_ref[...]
        g = jax.nn.sigmoid(gt[:, :h_pad])       # static, 128-aligned slices
        t = jnp.maximum(gt[:, h_pad:], 0.0)
        x = x + g * (t - x)                     # == g*t + (1-g)*x, f32 math

    out_ref[...] = x.astype(out_ref.dtype)


def prepare_params(word_vectors, w_proj,
                   w_t0, b_t0, w_g0, b_g0,
                   w_t1, b_t1, w_g1, b_g1,
                   *, compute_dtype=jnp.bfloat16):
    """One-time parameter prep: pad feature dims to 128 and fuse gate/transform.

    Zero padding is mathematically inert: padded x-columns stay exactly 0
    through the highway blend (g=0.5, t=0 -> 0) and are sliced off at the end.
    """
    V, D_e = word_vectors.shape
    H = w_proj.shape[1]
    D_pad = _round_up(D_e, 128)
    H_pad = _round_up(H, 128)
    f32 = jnp.float32

    # Table stays f32 so each gathered row is a clean 32-bit-granular DMA.
    wv = jnp.zeros((V, D_pad), f32).at[:, :D_e].set(word_vectors.astype(f32))

    wp = jnp.zeros((D_pad, H_pad), f32).at[:D_e, :H].set(
        w_proj.astype(f32)).astype(compute_dtype)

    def fuse_layer(w_g, b_g, w_t, b_t):
        w = jnp.zeros((H_pad, 2 * H_pad), f32)
        w = w.at[:H, :H].set(w_g.astype(f32))
        w = w.at[:H, H_pad:H_pad + H].set(w_t.astype(f32))
        b = jnp.zeros((1, 2 * H_pad), f32)
        b = b.at[0, :H].set(b_g.astype(f32))
        b = b.at[0, H_pad:H_pad + H].set(b_t.astype(f32))
        return w.astype(compute_dtype), b       # bias stays f32 (added to f32 acc)

    w0, b0 = fuse_layer(w_g0, b_g0, w_t0, b_t0)
    w1, b1 = fuse_layer(w_g1, b_g1, w_t1, b_t1)
    return dict(wv=wv, wp=wp, w0=w0, b0=b0, w1=w1, b1=b1, D_e=D_e, H=H)


def embedding_forward(x_ids, params, *, tm=512, padded_output=False,
                      out_dtype=jnp.float32):
    """x_ids: (B, S) int token indices.  Returns (B, S, H) out_dtype."""
    B, S = x_ids.shape
    wv, wp = params["wv"], params["wp"]
    w0, b0, w1, b1 = params["w0"], params["b0"], params["w1"], params["b1"]
    H = params["H"]
    V, D_pad = wv.shape
    H_pad = wp.shape[1]

    N = B * S
    n8 = _round_up(N, 8)
    tm = max(8, min(tm, n8))
    # Keep >= 2 grid steps when possible so the single "parallel" row axis can
    # shard across both TensorCores on v7x (one extra ~0.35us step elsewhere).
    if n8 >= 16 and tm >= n8:
        tm = _round_up((n8 + 1) // 2, 8)
    N_pad = _round_up(N, tm)

    # Flattened, zero-padded ids (padded rows gather table row 0; their output
    # is sliced off below).  NOTE: ids live in SMEM via scalar prefetch.
    ids = jnp.zeros((N_pad,), jnp.int32).at[:N].set(
        x_ids.reshape(-1).astype(jnp.int32))

    full = lambda i, ids_ref: (0, 0)
    rows = lambda i, ids_ref: (i, 0)

    out = pl.pallas_call(
        functools.partial(_embedding_kernel, h_pad=H_pad, tm=tm),
        out_shape=jax.ShapeDtypeStruct((N_pad, H_pad), out_dtype),
        grid_spec=pltpu.PrefetchScalarGridSpec(
            num_scalar_prefetch=1,                   # ids -> SMEM
            grid=(N_pad // tm,),
            in_specs=[
                pl.BlockSpec(memory_space=pl.ANY),       # padded table in HBM
                pl.BlockSpec((D_pad, H_pad), full),      # w_proj (resident)
                pl.BlockSpec((H_pad, 2 * H_pad), full),  # fused highway-0 W
                pl.BlockSpec((1, 2 * H_pad), full),      # fused highway-0 b
                pl.BlockSpec((H_pad, 2 * H_pad), full),  # fused highway-1 W
                pl.BlockSpec((1, 2 * H_pad), full),      # fused highway-1 b
            ],
            out_specs=pl.BlockSpec((tm, H_pad), rows),
            scratch_shapes=[
                pltpu.VMEM((tm, D_pad), jnp.float32),    # gathered token rows
                pltpu.SemaphoreType.DMA((1,)),
            ]),
        compiler_params=pltpu.CompilerParams(
            dimension_semantics=("parallel",),
            vmem_limit_bytes=32 * 1024 * 1024),
    )(ids, wv, wp, w0, b0, w1, b1)

    if padded_output:
        return out                       # (N_pad, H_pad); pad rows/lanes are junk
    return out[:N, :H].reshape(B, S, H)


def _reference(x_ids, word_vectors, w_proj,
               w_t0, b_t0, w_g0, b_g0, w_t1, b_t1, w_g1, b_g1):
    emb = word_vectors[x_ids]                      # (B, S, D_e)
    x = emb @ w_proj                               # (B, S, H)
    for (wt, bt, wg, bg) in ((w_t0, b_t0, w_g0, b_g0), (w_t1, b_t1, w_g1, b_g1)):
        g = jax.nn.sigmoid(x @ wg + bg)
        t = jnp.maximum(x @ wt + bt, 0.0)
        x = g * t + (1.0 - g) * x
    return x


if __name__ == "__main__":
    # small shapes: batch=2, seq=8, vocab=64, embed_dim=48, hidden=32
    B, S, V, D_e, H = 2, 8, 64, 48, 32
    drop_prob = 0.1  # unused at inference time

    key = jax.random.PRNGKey(0)
    ks = jax.random.split(key, 12)

    word_vectors = jax.random.normal(ks[0], (V, D_e), jnp.float32)
    # PyTorch Linear stores W as (out, in); we keep (in, out) so kernel does x @ W.
    w_proj = jax.random.normal(ks[1], (D_e, H), jnp.float32) * 0.1
    w_t0 = jax.random.normal(ks[2], (H, H), jnp.float32) * 0.1
    b_t0 = jax.random.normal(ks[3], (H,), jnp.float32) * 0.1
    w_g0 = jax.random.normal(ks[4], (H, H), jnp.float32) * 0.1
    b_g0 = jax.random.normal(ks[5], (H,), jnp.float32) * 0.1
    w_t1 = jax.random.normal(ks[6], (H, H), jnp.float32) * 0.1
    b_t1 = jax.random.normal(ks[7], (H,), jnp.float32) * 0.1
    w_g1 = jax.random.normal(ks[8], (H, H), jnp.float32) * 0.1
    b_g1 = jax.random.normal(ks[9], (H,), jnp.float32) * 0.1

    x_ids = jax.random.randint(ks[10], (B, S), 0, V, jnp.int32)

    raw = (word_vectors, w_proj, w_t0, b_t0, w_g0, b_g0,
           w_t1, b_t1, w_g1, b_g1)
    ref = _reference(x_ids, *raw)

    # f32 compute path: tight check of gather + fused proj/highway logic.
    p32 = prepare_params(*raw, compute_dtype=jnp.float32)
    out32 = jax.block_until_ready(embedding_forward(x_ids, p32))
    np.testing.assert_allclose(np.asarray(out32), np.asarray(ref),
                               rtol=1e-5, atol=2e-5)

    # bf16 compute path (default): bf16 MXU operands with f32 accumulation;
    # operand-cast error accumulates over the two highway layers, so the
    # tolerance is intentionally looser (documented, not a kernel bug).
    pbf = prepare_params(*raw)   # compute_dtype=bf16
    outbf = jax.block_until_ready(embedding_forward(x_ids, pbf))
    np.testing.assert_allclose(np.asarray(outbf), np.asarray(ref),
                               rtol=5e-2, atol=5e-2)

    print("KERNEL_OK")
</pallas_src>

<mosaic_0001>
module attributes {stable_mosaic.version = 11 : i64} {
  func.func @_embedding_kernel(%arg0: i32, %arg1: memref<16xi32, #tpu.memory_space<smem>>, %arg2: memref<64x128xf32, #tpu.memory_space<any>>, %arg3: memref<128x128xf32, #tpu.memory_space<vmem>>, %arg4: memref<128x256xf32, #tpu.memory_space<vmem>>, %arg5: memref<1x256xf32, #tpu.memory_space<vmem>>, %arg6: memref<128x256xf32, #tpu.memory_space<vmem>>, %arg7: memref<1x256xf32, #tpu.memory_space<vmem>>, %arg8: memref<8x128xf32, #tpu.memory_space<vmem>>, %arg9: memref<8x128xf32, #tpu.memory_space<vmem>>, %arg10: memref<1x!tpu.dma_semaphore, #tpu.memory_space<semaphore_mem>>) attributes {dimension_semantics = [#tpu.dimension_semantics<parallel>], iteration_bounds = array<i64: 2>, scalar_prefetch = 1 : i64, scratch_operands = 2 : i64, tpu.core_type = #tpu.core_type<tc>, window_params = [{}, {pipeline_mode = #tpu.pipeline_mode<synchronous>, transform_indices = @transform_1, window_bounds = array<i64: 128, 128>}, {pipeline_mode = #tpu.pipeline_mode<synchronous>, transform_indices = @transform_2, window_bounds = array<i64: 128, 256>}, {pipeline_mode = #tpu.pipeline_mode<synchronous>, transform_indices = @transform_3, window_bounds = array<i64: 1, 256>}, {pipeline_mode = #tpu.pipeline_mode<synchronous>, transform_indices = @transform_4, window_bounds = array<i64: 128, 256>}, {pipeline_mode = #tpu.pipeline_mode<synchronous>, transform_indices = @transform_5, window_bounds = array<i64: 1, 256>}, {transform_indices = @transform_6, window_bounds = array<i64: 8, 128>}]} {
    %c8_i32 = arith.constant 8 : i32
    %0 = arith.muli %arg0, %c8_i32 : i32
    %c0_i32 = arith.constant 0 : i32
    %c8_i32_0 = arith.constant 8 : i32
    %1 = arith.addi %c0_i32, %c8_i32_0 : i32
    %c1_i32 = arith.constant 1 : i32
    scf.for %arg11 = %c0_i32 to %1 step %c1_i32  : i32 {
      %42 = arith.addi %0, %arg11 : i32
      %43 = arith.index_cast %42 : i32 to index
      %44 = memref.load %arg1[%43] : memref<16xi32, #tpu.memory_space<smem>>
      %c0_i32_22 = arith.constant 0 : i32
      %c0_i32_23 = arith.constant 0 : i32
      %45 = tpu.memref_slice %arg2[%44, %c0_i32_23] : memref<64x128xf32, #tpu.memory_space<any>> -> memref<1x128xf32, #tpu.memory_space<any>>
      %c0_i32_24 = arith.constant 0 : i32
      %46 = tpu.memref_slice %arg9[%arg11, %c0_i32_24] : memref<8x128xf32, #tpu.memory_space<vmem>> -> memref<1x128xf32, #tpu.memory_space<vmem>>
      %47 = tpu.memref_slice %arg10[%c0_i32_22] : memref<1x!tpu.dma_semaphore, #tpu.memory_space<semaphore_mem>> -> memref<1x!tpu.dma_semaphore, #tpu.memory_space<semaphore_mem>>
      %48 = tpu.memref_squeeze %47 : memref<1x!tpu.dma_semaphore, #tpu.memory_space<semaphore_mem>> -> memref<!tpu.dma_semaphore, #tpu.memory_space<semaphore_mem>>
      tpu.enqueue_dma source(%45 : memref<1x128xf32, #tpu.memory_space<any>>) target(%46 : memref<1x128xf32, #tpu.memory_space<vmem>>) target_semaphore(%48 : memref<!tpu.dma_semaphore, #tpu.memory_space<semaphore_mem>>)
    }
    %c8_i32_1 = arith.constant 8 : i32
    %c0_i32_2 = arith.constant 0 : i32
    %2 = tpu.memref_slice %arg10[%c0_i32_2] : memref<1x!tpu.dma_semaphore, #tpu.memory_space<semaphore_mem>> -> memref<1x!tpu.dma_semaphore, #tpu.memory_space<semaphore_mem>>
    %3 = tpu.memref_squeeze %2 : memref<1x!tpu.dma_semaphore, #tpu.memory_space<semaphore_mem>> -> memref<!tpu.dma_semaphore, #tpu.memory_space<semaphore_mem>>
    tpu.wait_dma2 semaphore(%3 : memref<!tpu.dma_semaphore, #tpu.memory_space<semaphore_mem>>) src(%arg9 : memref<8x128xf32, #tpu.memory_space<vmem>>) dst(%arg9 : memref<8x128xf32, #tpu.memory_space<vmem>>)
    %c0 = arith.constant 0 : index
    %c0_3 = arith.constant 0 : index
    %4 = vector.load %arg9[%c0, %c0_3] : memref<8x128xf32, #tpu.memory_space<vmem>>, vector<8x128xf32>
    %c0_4 = arith.constant 0 : index
    %c0_5 = arith.constant 0 : index
    %5 = vector.load %arg3[%c0_4, %c0_5] : memref<128x128xf32, #tpu.memory_space<vmem>>, vector<128x128xf32>
    %cst = arith.constant dense<0.000000e+00> : vector<8x128xf32>
    %6 = tpu.matmul %4, %5, %cst {dimension_numbers = #tpu.dot_dimension_numbers<[1], [0], [0], [1], [0, 0, 1, 1], [], []>} : vector<8x128xf32>, vector<128x128xf32>, vector<8x128xf32> -> vector<8x128xf32>
    %c0_6 = arith.constant 0 : index
    %c0_7 = arith.constant 0 : index
    %7 = vector.load %arg4[%c0_6, %c0_7] : memref<128x256xf32, #tpu.memory_space<vmem>>, vector<128x256xf32>
    %cst_8 = arith.constant dense<0.000000e+00> : vector<8x256xf32>
    %8 = tpu.matmul %6, %7, %cst_8 {dimension_numbers = #tpu.dot_dimension_numbers<[1], [0], [0], [1], [0, 0, 1, 1], [], []>} : vector<8x128xf32>, vector<128x256xf32>, vector<8x256xf32> -> vector<8x256xf32>
    %c0_9 = arith.constant 0 : index
    %c0_10 = arith.constant 0 : index
    %9 = vector.load %arg5[%c0_9, %c0_10] : memref<1x256xf32, #tpu.memory_space<vmem>>, vector<1x256xf32>
    %10 = vector.broadcast %9 : vector<1x256xf32> to vector<8x256xf32>
    %11 = arith.addf %8, %10 : vector<8x256xf32>
    %12 = vector.extract_strided_slice %11 {offsets = [0, 0], sizes = [8, 128], strides = [1, 1]} : vector<8x256xf32> to vector<8x128xf32>
    %13 = arith.negf %12 : vector<8x128xf32>
    %14 = math.exp %13 : vector<8x128xf32>
    %cst_11 = arith.constant 1.000000e+00 : f32
    %15 = vector.broadcast %cst_11 : f32 to vector<8x128xf32>
    %16 = arith.addf %15, %14 : vector<8x128xf32>
    %17 = arith.divf %15, %16 : vector<8x128xf32>
    %18 = vector.extract_strided_slice %11 {offsets = [0, 128], sizes = [8, 128], strides = [1, 1]} : vector<8x256xf32> to vector<8x128xf32>
    %cst_12 = arith.constant 0.000000e+00 : f32
    %19 = vector.broadcast %cst_12 : f32 to vector<8x128xf32>
    %20 = arith.maximumf %18, %19 : vector<8x128xf32>
    %21 = arith.subf %20, %6 : vector<8x128xf32>
    %22 = arith.mulf %17, %21 : vector<8x128xf32>
    %23 = arith.addf %6, %22 : vector<8x128xf32>
    %c0_13 = arith.constant 0 : index
    %c0_14 = arith.constant 0 : index
    %24 = vector.load %arg6[%c0_13, %c0_14] : memref<128x256xf32, #tpu.memory_space<vmem>>, vector<128x256xf32>
    %cst_15 = arith.constant dense<0.000000e+00> : vector<8x256xf32>
    %25 = tpu.matmul %23, %24, %cst_15 {dimension_numbers = #tpu.dot_dimension_numbers<[1], [0], [0], [1], [0, 0, 1, 1], [], []>} : vector<8x128xf32>, vector<128x256xf32>, vector<8x256xf32> -> vector<8x256xf32>
    %c0_16 = arith.constant 0 : index
    %c0_17 = arith.constant 0 : index
    %26 = vector.load %arg7[%c0_16, %c0_17] : memref<1x256xf32, #tpu.memory_space<vmem>>, vector<1x256xf32>
    %27 = vector.broadcast %26 : vector<1x256xf32> to vector<8x256xf32>
    %28 = arith.addf %25, %27 : vector<8x256xf32>
    %29 = vector.extract_strided_slice %28 {offsets = [0, 0], sizes = [8, 128], strides = [1, 1]} : vector<8x256xf32> to vector<8x128xf32>
    %30 = arith.negf %29 : vector<8x128xf32>
    %31 = math.exp %30 : vector<8x128xf32>
    %cst_18 = arith.constant 1.000000e+00 : f32
    %32 = vector.broadcast %cst_18 : f32 to vector<8x128xf32>
    %33 = arith.addf %32, %31 : vector<8x128xf32>
    %34 = arith.divf %32, %33 : vector<8x128xf32>
    %35 = vector.extract_strided_slice %28 {offsets = [0, 128], sizes = [8, 128], strides = [1, 1]} : vector<8x256xf32> to vector<8x128xf32>
    %cst_19 = arith.constant 0.000000e+00 : f32
    %36 = vector.broadcast %cst_19 : f32 to vector<8x128xf32>
    %37 = arith.maximumf %35, %36 : vector<8x128xf32>
    %38 = arith.subf %37, %23 : vector<8x128xf32>
    %39 = arith.mulf %34, %38 : vector<8x128xf32>
    %40 = arith.addf %23, %39 : vector<8x128xf32>
    %c0_20 = arith.constant 0 : index
    %c0_21 = arith.constant 0 : index
    %41 = vector.load %arg8[%c0_20, %c0_21] : memref<8x128xf32, #tpu.memory_space<vmem>>, vector<8x128xf32>
    tpu.vector_store %arg8[%c0_20, %c0_21], %40 {strides = array<i32>} : memref<8x128xf32, #tpu.memory_space<vmem>>, vector<8x128xf32>,
    return
  }
  func.func @transform_1(%arg0: i32, %arg1: memref<16xi32, #tpu.memory_space<smem>>) -> (i32, i32) {
    %c0_i32 = arith.constant 0 : i32
    %c0_i32_0 = arith.constant 0 : i32
    %c0_i32_1 = arith.constant 0 : i32
    return %c0_i32, %c0_i32_0 : i32, i32
  }
  func.func @transform_2(%arg0: i32, %arg1: memref<16xi32, #tpu.memory_space<smem>>) -> (i32, i32) {
    %c0_i32 = arith.constant 0 : i32
    %c0_i32_0 = arith.constant 0 : i32
    %c0_i32_1 = arith.constant 0 : i32
    return %c0_i32, %c0_i32_0 : i32, i32
  }
  func.func @transform_3(%arg0: i32, %arg1: memref<16xi32, #tpu.memory_space<smem>>) -> (i32, i32) {
    %c0_i32 = arith.constant 0 : i32
    %c0_i32_0 = arith.constant 0 : i32
    %c0_i32_1 = arith.constant 0 : i32
    return %c0_i32, %c0_i32_0 : i32, i32
  }
  func.func @transform_4(%arg0: i32, %arg1: memref<16xi32, #tpu.memory_space<smem>>) -> (i32, i32) {
    %c0_i32 = arith.constant 0 : i32
    %c0_i32_0 = arith.constant 0 : i32
    %c0_i32_1 = arith.constant 0 : i32
    return %c0_i32, %c0_i32_0 : i32, i32
  }
  func.func @transform_5(%arg0: i32, %arg1: memref<16xi32, #tpu.memory_space<smem>>) -> (i32, i32) {
    %c0_i32 = arith.constant 0 : i32
    %c0_i32_0 = arith.constant 0 : i32
    %c0_i32_1 = arith.constant 0 : i32
    return %c0_i32, %c0_i32_0 : i32, i32
  }
  func.func @transform_6(%arg0: i32, %arg1: memref<16xi32, #tpu.memory_space<smem>>) -> (i32, i32) {
    %c0_i32 = arith.constant 0 : i32
    %c0_i32_0 = arith.constant 0 : i32
    return %arg0, %c0_i32 : i32, i32
  }
}

</mosaic_0001>

<llo_original>
// kernel: tpu_custom_call.1
$region0: #{tpu_custom_call.1}
  #allocation0 [shape = 'u32[]', space=smem, size = 0x4, offset = 0x4, fixed_abs, tag = 'smem constant byte address 0x4 - core index']
  #allocation1 [shape = 'u32[144,128]{1,0:T(1,128)}', space=vmem, size = 0x12000, scoped, tag = 'internal scratch']
  #allocation2 [shape = 'f32[8,128]{1,0:T(8,128)}', space=vmem, size = 0x1000, scoped, tag = 'scratch operand']
  #allocation3 [shape = 's32[1]{0}', space=sflag, size = 0x4, scoped, tag = 'scratch operand']
  #allocation4 [shape = 's32[1]{0}', space=sflag, size = 0x4, scoped, tag = 'scoped memory for tpu_custom_call.1']
  #allocation5 [shape = 'u8[512]{0}', space=smem, size = 0x200, scoped, tag = 'prefetched SMEM operand 0']
  #allocation13 [shape = 's32[]', space=sflag, size = 0x4, offset = 0, fixed_abs, tag = 'sflag constant byte address 0x0 - dummy sync flag']
  #allocation14 [shape = 's32[]', space=sflag, size = 0x4, offset = 0, fixed_abs, tag = 'sflag constant byte address 0x0 - dummy sync flag']
  #allocation15 [shape = 'u32[]', space=smem, size = 0x4, offset = 0x44, fixed_abs, tag = 'smem constant byte address 0x44 - assertion arg 0']
  #allocation16 [shape = 'u32[]', space=smem, size = 0x4, offset = 0x48, fixed_abs, tag = 'smem constant byte address 0x48 - assertion arg 1']
  %s0 = inlined_call_operand.hbm [shape: s32[16], index: 0, kind: input, shape index: {}]
  %s1 = inlined_call_operand.hbm [shape: f32[64,128], index: 1, kind: input, shape index: {}]
  %s2 = inlined_call_operand.hbm [shape: f32[128,128], index: 2, kind: input, shape index: {}]
  %s3 = inlined_call_operand.hbm [shape: f32[128,256], index: 3, kind: input, shape index: {}]
  %s4 = inlined_call_operand.vmem [shape: f32[1,256], index: 4, kind: input, shape index: {}]
  %s5 = inlined_call_operand.hbm [shape: f32[128,256], index: 5, kind: input, shape index: {}]
  %s6 = inlined_call_operand.vmem [shape: f32[1,256], index: 6, kind: input, shape index: {}]
  %s7 = inlined_call_operand.hbm [shape: f32[16,128], index: 7, kind: output, shape index: {}]
  %s8 = sld [smem:[#allocation0]]
  $region76: #{tpu_custom_call.1} parent=0
    _
  %s10 = ssub.s32 1, %s8
  %s11 = scalar_select 0, %s10, %s8
  %13 = dma.hbm_to_smem %s0, 16, [#allocation5], [#allocation4]
  %14 = dma.done [#allocation4], 16
  %15 = sfence
  $region1: #{tpu_custom_call.1} parent=0
    #allocation6 [shape = 'u8[65536]{0}', space=vmem, size = 0x10000, scoped, tag = 'input window, operand 2, single buffered']
    #allocation7 [shape = 's32[2]{0}', space=sflag, size = 0x8, scoped, tag = 'scoped memory for tpu_custom_call.1']
    #allocation8 [shape = 's32[2]{0}', space=sflag, size = 0x8, scoped, tag = 'scoped memory for tpu_custom_call.1']
    #allocation9 [shape = 'u8[131072]{0}', space=vmem, size = 0x20000, scoped, tag = 'input window, operand 3, single buffered']
    #allocation10 [shape = 's32[1]{0}', space=sflag, size = 0x4, scoped, tag = 'scoped memory for tpu_custom_call.1']
    #allocation11 [shape = 'u8[131072]{0}', space=vmem, size = 0x20000, scoped, tag = 'input window, operand 5, single buffered']
    #allocation12 [shape = 'u8[8192]{0}', space=vmem, size = 0x2000, scoped, tag = 'output window, operand 0']
    %16 = vsyncpa [#allocation7], 0
    %17 = vsyncpa [#allocation10], 0
    %18 = vsyncpa [#allocation8], 0
    %s19 = scalar_lea.sflag [#allocation8], 1
    %20 = vsyncpa %s19, 0
    loop: start=0, step=1, limit=4
    $region2: #{tpu_custom_call.1} parent=1 // loop_pre_header
      _
    $region3: #{tpu_custom_call.1} parent=1 // loop_header
      %s22 = sphi 0, %s26
      %p23 = scmp.ge.s32.totalorder %s22, 4
      %s30 = sphi 0, %s30
      %s32 = sphi 0, %s30
      %s33 = sphi 0, %s32
      %s47 = sphi 0, %s33
      %s51 = sphi 0, %s51
      %s53 = sphi 0, %s51
      %s54 = sphi 0, %s53
      %s68 = sphi 0, %s54
      %s72 = sphi 0, %s72
      %s74 = sphi 0, %s72
      %s75 = sphi 0, %s74
      %s89 = sphi 0, %s75
      %s93 = sphi 0, %s93
      %s95 = sphi 0, %s93
      %s96 = sphi 0, %s95
      %s110 = sphi 0, %s96
      %s114 = sphi 0, %s114
      %s116 = sphi 0, %s114
      %s117 = sphi 0, %s116
      %s131 = sphi 0, %s117
      %s137 = sphi 0, %s139
      %s140 = sphi 0, %s137
      %s141 = sphi 0, %s140
      %s157 = sphi 0, %s141
    $region4: #{tpu_custom_call.1} parent=1 // loop_header_branch
      %25 = sbr.rel (%p23) target = $region8
    $region5: #{tpu_custom_call.1} parent=1 // loop_body
      %s27 = ssub.s32 %s22, 1
      %s28 = ssub.s32 %s22, 2
      %s29 = sadd.s32 %s22, 1
      %s31 = sadd.s32 %s30, 1
      %p34 = scmp.eq.s32.totalorder %s22, 1
      %p35 = scmp.ne.s32.totalorder %s30, %s32
      %p36 = scmp.eq.s32.totalorder %s22, 0
      %p37 = por %p35, %p36
      %p38 = scmp.ne.s32.totalorder %s30, %s32
      %p39 = scmp.eq.s32.totalorder %s27, 1
      %p40 = por %p38, %p39
      %p41 = scmp.ne.s32.totalorder %s32, %s33
      %p42 = scmp.eq.s32.totalorder %s27, 0
      %p43 = por %p41, %p42
      %p44 = scmp.ne.s32.totalorder %s32, %s33
      %p45 = scmp.eq.s32.totalorder %s28, 1
      %p46 = por %p44, %p45
      %p48 = scmp.ne.s32.totalorder %s33, %s47
      %p49 = scmp.eq.s32.totalorder %s28, 0
      %p50 = por %p48, %p49
      %s52 = sadd.s32 %s51, 1
      %p55 = scmp.eq.s32.totalorder %s22, 1
      %p56 = scmp.ne.s32.totalorder %s51, %s53
      %p57 = scmp.eq.s32.totalorder %s22, 0
      %p58 = por %p56, %p57
      %p59 = scmp.ne.s32.totalorder %s51, %s53
      %p60 = scmp.eq.s32.totalorder %s27, 1
      %p61 = por %p59, %p60
      %p62 = scmp.ne.s32.totalorder %s53, %s54
      %p63 = scmp.eq.s32.totalorder %s27, 0
      %p64 = por %p62, %p63
      %p65 = scmp.ne.s32.totalorder %s53, %s54
      %p66 = scmp.eq.s32.totalorder %s28, 1
      %p67 = por %p65, %p66
      %p69 = scmp.ne.s32.totalorder %s54, %s68
      %p70 = scmp.eq.s32.totalorder %s28, 0
      %p71 = por %p69, %p70
      %s73 = sadd.s32 %s72, 1
      %p76 = scmp.eq.s32.totalorder %s22, 1
      %p77 = scmp.ne.s32.totalorder %s72, %s74
      %p78 = scmp.eq.s32.totalorder %s22, 0
      %p79 = por %p77, %p78
      %p80 = scmp.ne.s32.totalorder %s72, %s74
      %p81 = scmp.eq.s32.totalorder %s27, 1
      %p82 = por %p80, %p81
      %p83 = scmp.ne.s32.totalorder %s74, %s75
      %p84 = scmp.eq.s32.totalorder %s27, 0
      %p85 = por %p83, %p84
      %p86 = scmp.ne.s32.totalorder %s74, %s75
      %p87 = scmp.eq.s32.totalorder %s28, 1
      %p88 = por %p86, %p87
      %p90 = scmp.ne.s32.totalorder %s75, %s89
      %p91 = scmp.eq.s32.totalorder %s28, 0
      %p92 = por %p90, %p91
      %s94 = sadd.s32 %s93, 1
      %p97 = scmp.eq.s32.totalorder %s22, 1
      %p98 = scmp.ne.s32.totalorder %s93, %s95
      %p99 = scmp.eq.s32.totalorder %s22, 0
      %p100 = por %p98, %p99
      %p101 = scmp.ne.s32.totalorder %s93, %s95
      %p102 = scmp.eq.s32.totalorder %s27, 1
      %p103 = por %p101, %p102
      %p104 = scmp.ne.s32.totalorder %s95, %s96
      %p105 = scmp.eq.s32.totalorder %s27, 0
      %p106 = por %p104, %p105
      %p107 = scmp.ne.s32.totalorder %s95, %s96
      %p108 = scmp.eq.s32.totalorder %s28, 1
      %p109 = por %p107, %p108
      %p111 = scmp.ne.s32.totalorder %s96, %s110
      %p112 = scmp.eq.s32.totalorder %s28, 0
      %p113 = por %p111, %p112
      %s115 = sadd.s32 %s114, 1
      %p118 = scmp.eq.s32.totalorder %s22, 1
      %p119 = scmp.ne.s32.totalorder %s114, %s116
      %p120 = scmp.eq.s32.totalorder %s22, 0
      %p121 = por %p119, %p120
      %p122 = scmp.ne.s32.totalorder %s114, %s116
      %p123 = scmp.eq.s32.totalorder %s27, 1
      %p124 = por %p122, %p123
      %p125 = scmp.ne.s32.totalorder %s116, %s117
      %p126 = scmp.eq.s32.totalorder %s27, 0
      %p127 = por %p125, %p126
      %p128 = scmp.ne.s32.totalorder %s116, %s117
      %p129 = scmp.eq.s32.totalorder %s28, 1
      %p130 = por %p128, %p129
      %p132 = scmp.ne.s32.totalorder %s117, %s131
      %p133 = scmp.eq.s32.totalorder %s28, 0
      %p134 = por %p132, %p133
      %s135 = ssub.s32 %s22, %s29
      %p136 = scmp.eq.s32.totalorder %s135, 0
      %s138 = sadd.s32 %s137, 1
      %s139 = scalar_select %p136, %s137, %s138
      %p142 = pneg %p136
      %p143 = scmp.eq.s32.totalorder %s22, 1
      %p144 = por %p142, %p143
      %p145 = scmp.ne.s32.totalorder %s137, %s140
      %p146 = scmp.eq.s32.totalorder %s22, 0
      %p147 = por %p145, %p146
      %p148 = scmp.ne.s32.totalorder %s137, %s140
      %p149 = scmp.eq.s32.totalorder %s27, 1
      %p150 = por %p148, %p149
      %p151 = scmp.ne.s32.totalorder %s140, %s141
      %p152 = scmp.eq.s32.totalorder %s27, 0
      %p153 = por %p151, %p152
      %p154 = scmp.ne.s32.totalorder %s140, %s141
      %p155 = scmp.eq.s32.totalorder %s28, 1
      %p156 = por %p154, %p155
      %p158 = scmp.ne.s32.totalorder %s141, %s157
      %p159 = scmp.eq.s32.totalorder %s28, 0
      %p160 = por %p158, %p159
      %p161 = scmp.le.s32.totalorder 1, %s22
      %p162 = scmp.lt.s32.totalorder %s22, 3
      %p163 = pnand %p161, %p162
      %p164 = pneg %p163
      // Predicated region
      $region9: #{tpu_custom_call.1} parent=5 // pred_check
        _
      $region10: #{tpu_custom_call.1} parent=5 // pred_check_branch
        %166 = sbr.rel (%p163) target = $region12
      $region11: #{tpu_custom_call.1} parent=5 // pred_region
        %s167 = ssub.s32 %s22, 1
        // Predicated region
        $region13: #{tpu_custom_call.1} parent=11 // pred_check
          %p168 = pneg %p43
        $region14: #{tpu_custom_call.1} parent=11 // pred_check_branch
          %170 = sbr.rel (%p168) target = $region16
        $region15: #{tpu_custom_call.1} parent=11 // pred_region
          %s172 = ssub.s32 2048, 2048
          %173 = vsyncadd [#allocation7], %s172
          %s174 = sshll.u32 [#allocation6], 4
          %s175 = int_to_ptr.vmem [resolvable:$true] %s174
          %180 = dma.hbm_to_vmem [thread:$0]  %s2, 2048, %s175, [#allocation7], 128, 128, 8
        $region16: #{tpu_custom_call.1} parent=11 // pred_fallthru
          _
        // Predicated region
        $region17: #{tpu_custom_call.1} parent=11 // pred_check
          %p181 = pneg %p64
        $region18: #{tpu_custom_call.1} parent=11 // pred_check_branch
          %183 = sbr.rel (%p181) target = $region20
        $region19: #{tpu_custom_call.1} parent=11 // pred_region
          %s185 = ssub.s32 4096, 4096
          %186 = vsyncadd [#allocation10], %s185
          %s187 = sshll.u32 [#allocation9], 4
          %s188 = int_to_ptr.vmem [resolvable:$true] %s187
          %193 = dma.hbm_to_vmem [thread:$0]  %s3, 4096, %s188, [#allocation10], 256, 256, 16
        $region20: #{tpu_custom_call.1} parent=11 // pred_fallthru
          _
        // Predicated region
        $region21: #{tpu_custom_call.1} parent=11 // pred_check
          %p194 = pneg %p85
        $region22: #{tpu_custom_call.1} parent=11 // pred_check_branch
          %196 = sbr.rel (%p194) target = $region24
        $region23: #{tpu_custom_call.1} parent=11 // pred_region
          _
        $region24: #{tpu_custom_call.1} parent=11 // pred_fallthru
          _
        // Predicated region
        $region25: #{tpu_custom_call.1} parent=11 // pred_check
          %p197 = pneg %p106
        $region26: #{tpu_custom_call.1} parent=11 // pred_check_branch
          %199 = sbr.rel (%p197) target = $region28
        $region27: #{tpu_custom_call.1} parent=11 // pred_region
          %s201 = ssub.s32 4096, 4096
          %202 = vsyncadd [#allocation10], %s201
          %s203 = sshll.u32 [#allocation11], 4
          %s204 = int_to_ptr.vmem [resolvable:$true] %s203
          %209 = dma.hbm_to_vmem [thread:$0]  %s5, 4096, %s204, [#allocation10], 256, 256, 16
        $region28: #{tpu_custom_call.1} parent=11 // pred_fallthru
          _
        // Predicated region
        $region29: #{tpu_custom_call.1} parent=11 // pred_check
          %p210 = pneg %p127
        $region30: #{tpu_custom_call.1} parent=11 // pred_check_branch
          %212 = sbr.rel (%p210) target = $region32
        $region31: #{tpu_custom_call.1} parent=11 // pred_region
          _
        $region32: #{tpu_custom_call.1} parent=11 // pred_fallthru
          _
      $region12: #{tpu_custom_call.1} parent=5 // pred_fallthru
        _
      %p213 = scmp.lt.s32.totalorder %s22, 2
      // Predicated region
      $region33: #{tpu_custom_call.1} parent=5 // pred_check
        %p214 = pneg %p213
      $region34: #{tpu_custom_call.1} parent=5 // pred_check_branch
        %216 = sbr.rel (%p214) target = $region36
      $region35: #{tpu_custom_call.1} parent=5 // pred_region
        _
      $region36: #{tpu_custom_call.1} parent=5 // pred_fallthru
        _
      %p217 = scmp.le.s32.totalorder 1, %s22
      %p218 = scmp.lt.s32.totalorder %s22, 3
      %p219 = pnand %p217, %p218
      %p220 = pneg %p219
      // Predicated region
      $region37: #{tpu_custom_call.1} parent=5 // pred_check
        _
      $region38: #{tpu_custom_call.1} parent=5 // pred_check_branch
        %222 = sbr.rel (%p219) target = $region40
      $region39: #{tpu_custom_call.1} parent=5 // pred_region
        %s223 = ssub.s32 %s22, 1
        // Predicated region
        $region41: #{tpu_custom_call.1} parent=39 // pred_check
          %p224 = pneg %p43
        $region42: #{tpu_custom_call.1} parent=39 // pred_check_branch
          %226 = sbr.rel (%p224) target = $region44
        $region43: #{tpu_custom_call.1} parent=39 // pred_region
          %227 = dma.done [#allocation7], 2048
        $region44: #{tpu_custom_call.1} parent=39 // pred_fallthru
          _
        // Predicated region
        $region45: #{tpu_custom_call.1} parent=39 // pred_check
          %p228 = pneg %p64
        $region46: #{tpu_custom_call.1} parent=39 // pred_check_branch
          %230 = sbr.rel (%p228) target = $region48
        $region47: #{tpu_custom_call.1} parent=39 // pred_region
          %231 = dma.done [#allocation10], 4096
        $region48: #{tpu_custom_call.1} parent=39 // pred_fallthru
          _
        // Predicated region
        $region49: #{tpu_custom_call.1} parent=39 // pred_check
          %p232 = pneg %p106
        $region50: #{tpu_custom_call.1} parent=39 // pred_check_branch
          %234 = sbr.rel (%p232) target = $region52
        $region51: #{tpu_custom_call.1} parent=39 // pred_region
          %235 = dma.done [#allocation10], 4096
        $region52: #{tpu_custom_call.1} parent=39 // pred_fallthru
          _
        %p236 = pneg %p43
        %p237 = pneg %p40
        %p238 = pneg %p64
        %p239 = pneg %p61
        %p240 = pneg %p85
        %p241 = pneg %p82
        %p242 = pneg %p106
        %p243 = pneg %p103
        %p244 = pneg %p127
        %p245 = pneg %p124
        %p246 = pneg %p153
        %p247 = pneg %p150
        %s248 = sand.u32 %s140, 1
        %s249 = scalar_lea.sflag [#allocation8], %s248
        %s250 = sand.u32 %s140, 1
        %s251 = smul.addr %s250, 8
        %s252 = scalar_lea.vmem [#allocation12], %s251
        %s253 = smul.u32 %s27, 8
        loop: start=0, step=1, limit=8
        $region53: #{tpu_custom_call.1} parent=39 // loop_pre_header
          _
        $region54: #{tpu_custom_call.1} parent=39 // loop_header
          %s255 = sphi 0, %s259
          %p256 = scmp.ge.s32.totalorder %s255, 8
        $region55: #{tpu_custom_call.1} parent=39 // loop_header_branch
          %258 = sbr.rel (%p256) target = $region59
        $region56: #{tpu_custom_call.1} parent=39 // loop_body
          %s260 = sadd.s32 %s253, %s255
          %s261 = sld [smem:[#allocation5 + %s260]]
          %s262 = smul.addr %s261, 16
          %s263 = scalar_lea.hbm %s1, %s262
          %s264 = scalar_lea.vmem [#allocation2], %s255
          // Predicated region
          $region60: #{tpu_custom_call.1} parent=56 // pred_check
            _
          $region61: #{tpu_custom_call.1} parent=56 // pred_check_branch
            %266 = sbr.rel target = $region63
          $region62: #{tpu_custom_call.1} parent=56 // pred_region
            %267 = sst [smem:[#allocation15]] [#allocation14]
            %268 = sst [smem:[#allocation16]] [#allocation13]
          $region63: #{tpu_custom_call.1} parent=56 // pred_fallthru
            _
          %270 = shalt.err (0)
          %s272 = sshll.u32 %s264, 4
          %s273 = int_to_ptr.vmem [resolvable:$true] %s272
          %275 = dma.hbm_to_vmem [thread:$0]  %s263, 16, %s273, [#allocation3]
        $region57: #{tpu_custom_call.1} parent=39 // loop_footer
          %s259 = sadd.s32 1, %s255
        $region58: #{tpu_custom_call.1} parent=39 // loop_footer_branch
          %254 = sbr.rel target = $region54
        $region59: #{tpu_custom_call.1} parent=39 // loop_exit
          _
        %s276 = smul.u32 8, 1
        %s277 = sshll.u32 %s276, 4
        %278 = dma.done [#allocation3], %s277
        %v279 = vld [vmem:[#allocation2] sm:$0xff]
        %v280 = vld [vmem:[#allocation6] sm:$0xff]
        %v281 = vld [vmem:[#allocation6 + $0x8] sm:$0xff]
        %v282 = vld [vmem:[#allocation6 + $0x10] sm:$0xff]
        %v283 = vld [vmem:[#allocation6 + $0x18] sm:$0xff]
        %v284 = vld [vmem:[#allocation6 + $0x20] sm:$0xff]
        %v285 = vld [vmem:[#allocation6 + $0x28] sm:$0xff]
        %v286 = vld [vmem:[#allocation6 + $0x30] sm:$0xff]
        %v287 = vld [vmem:[#allocation6 + $0x38] sm:$0xff]
        %v288 = vld [vmem:[#allocation6 + $0x40] sm:$0xff]
        %v289 = vld [vmem:[#allocation6 + $0x48] sm:$0xff]
        %v290 = vld [vmem:[#allocation6 + $0x50] sm:$0xff]
        %v291 = vld [vmem:[#allocation6 + $0x58] sm:$0xff]
        %v292 = vld [vmem:[#allocation6 + $0x60] sm:$0xff]
        %v293 = vld [vmem:[#allocation6 + $0x68] sm:$0xff]
        %v294 = vld [vmem:[#allocation6 + $0x70] sm:$0xff]
        %v295 = vld [vmem:[#allocation6 + $0x78] sm:$0xff]
        %296 = vmatprep.subr.mxu0 0.0
        %297 = vmatpush1.msra.mxu0 %v295
        %298 = vmatprep.subr.mxu0 0.0
        %299 = vmatpush1.msra.mxu0 %v294
        %300 = vmatprep.subr.mxu0 0.0
        %301 = vmatpush1.msra.mxu0 %v293
        %302 = vmatprep.subr.mxu0 0.0
        %303 = vmatpush1.msra.mxu0 %v292
        %304 = vmatprep.subr.mxu0 0.0
        %305 = vmatpush1.msra.mxu0 %v291
        %306 = vmatprep.subr.mxu0 0.0
        %307 = vmatpush1.msra.mxu0 %v290
        %308 = vmatprep.subr.mxu0 0.0
        %309 = vmatpush1.msra.mxu0 %v289
        %310 = vmatprep.subr.mxu0 0.0
        %311 = vmatpush1.msra.mxu0 %v288
        %312 = vmatprep.subr.mxu0 0.0
        %313 = vmatpush1.msra.mxu0 %v287
        %314 = vmatprep.subr.mxu0 0.0
        %315 = vmatpush1.msra.mxu0 %v286
        %316 = vmatprep.subr.mxu0 0.0
        %317 = vmatpush1.msra.mxu0 %v285
        %318 = vmatprep.subr.mxu0 0.0
        %319 = vmatpush1.msra.mxu0 %v284
        %320 = vmatprep.subr.mxu0 0.0
        %321 = vmatpush1.msra.mxu0 %v283
        %322 = vmatprep.subr.mxu0 0.0
        %323 = vmatpush1.msra.mxu0 %v282
        %324 = vmatprep.subr.mxu0 0.0
        %325 = vmatpush1.msra.mxu0 %v281
        %326 = vmatprep.subr.mxu0 0.0
        %327 = vmatpush1.msra.mxu0 %v280
        %328 = vmatprep.subr.mxu0 0.0
        %329 = vmatpush2.msra.mxu0 0.0
        %330 = vmatprep.subr.mxu0 0.0
        %331 = vmatpush2.msra.mxu0 0.0
        %332 = vmatprep.subr.mxu0 0.0
        %333 = vmatpush2.msra.mxu0 0.0
        %334 = vmatprep.subr.mxu0 0.0
        %335 = vmatpush2.msra.mxu0 0.0
        %336 = vmatprep.subr.mxu0 0.0
        %337 = vmatpush2.msra.mxu0 0.0
        %338 = vmatprep.subr.mxu0 0.0
        %339 = vmatpush2.msra.mxu0 0.0
        %340 = vmatprep.subr.mxu0 0.0
        %341 = vmatpush2.msra.mxu0 0.0
        %342 = vmatprep.subr.mxu0 0.0
        %343 = vmatpush2.msra.mxu0 0.0
        %344 = vmatprep.subr.mxu0 0.0
        %345 = vmatpush2.msra.mxu0 0.0
        %346 = vmatprep.subr.mxu0 0.0
        %347 = vmatpush2.msra.mxu0 0.0
        %348 = vmatprep.subr.mxu0 0.0
        %349 = vmatpush2.msra.mxu0 0.0
        %350 = vmatprep.subr.mxu0 0.0
        %351 = vmatpush2.msra.mxu0 0.0
        %352 = vmatprep.subr.mxu0 0.0
        %353 = vmatpush2.msra.mxu0 0.0
        %354 = vmatprep.subr.mxu0 0.0
        %355 = vmatpush2.msra.mxu0 0.0
        %356 = vmatprep.subr.mxu0 0.0
        %357 = vmatpush2.msra.mxu0 0.0
        %358 = vmatprep.subr.mxu0 0.0
        %359 = vmatpush2.msra.mxu0 0.0
        %360 = vmatprep.mubr.f32.mxu0 0.0
        %361 = vmatmul.mubr.f32.gmra.mxu0 %v279
        %v362 = vpop.f32.mrf.mxu0
        %v363 = vadd.f32 0.0, %v362
        %v364 = vpop.f32.mrf.mxu0
        %365 = vdwg.mxu0
        %v366 = vld [vmem:[#allocation9] sm:$0xff]
        %v367 = vld [vmem:[#allocation9 + $0x8] sm:$0xff]
        %v368 = vld [vmem:[#allocation9 + $0x10] sm:$0xff]
        %v369 = vld [vmem:[#allocation9 + $0x18] sm:$0xff]
        %v370 = vld [vmem:[#allocation9 + $0x20] sm:$0xff]
        %v371 = vld [vmem:[#allocation9 + $0x28] sm:$0xff]
        %v372 = vld [vmem:[#allocation9 + $0x30] sm:$0xff]
        %v373 = vld [vmem:[#allocation9 + $0x38] sm:$0xff]
        %v374 = vld [vmem:[#allocation9 + $0x40] sm:$0xff]
        %v375 = vld [vmem:[#allocation9 + $0x48] sm:$0xff]
        %v376 = vld [vmem:[#allocation9 + $0x50] sm:$0xff]
        %v377 = vld [vmem:[#allocation9 + $0x58] sm:$0xff]
        %v378 = vld [vmem:[#allocation9 + $0x60] sm:$0xff]
        %v379 = vld [vmem:[#allocation9 + $0x68] sm:$0xff]
        %v380 = vld [vmem:[#allocation9 + $0x70] sm:$0xff]
        %v381 = vld [vmem:[#allocation9 + $0x78] sm:$0xff]
        %v382 = vld [vmem:[#allocation9 + $0x80] sm:$0xff]
        %v383 = vld [vmem:[#allocation9 + $0x88] sm:$0xff]
        %v384 = vld [vmem:[#allocation9 + $0x90] sm:$0xff]
        %v385 = vld [vmem:[#allocation9 + $0x98] sm:$0xff]
        %v386 = vld [vmem:[#allocation9 + $0xa0] sm:$0xff]
        %v387 = vld [vmem:[#allocation9 + $0xa8] sm:$0xff]
        %v388 = vld [vmem:[#allocation9 + $0xb0] sm:$0xff]
        %v389 = vld [vmem:[#allocation9 + $0xb8] sm:$0xff]
        %v390 = vld [vmem:[#allocation9 + $0xc0] sm:$0xff]
        %v391 = vld [vmem:[#allocation9 + $0xc8] sm:$0xff]
        %v392 = vld [vmem:[#allocation9 + $0xd0] sm:$0xff]
        %v393 = vld [vmem:[#allocation9 + $0xd8] sm:$0xff]
        %v394 = vld [vmem:[#allocation9 + $0xe0] sm:$0xff]
        %v395 = vld [vmem:[#allocation9 + $0xe8] sm:$0xff]
        %v396 = vld [vmem:[#allocation9 + $0xf0] sm:$0xff]
        %v397 = vld [vmem:[#allocation9 + $0xf8] sm:$0xff]
        %v398 = vld [vmem:[%s4] sm:$0x3]
        %v400 = vlaneseq
        %v401 = vshrl.u32 %v400, 7
        %v402 = vsub.s32 0, %v401
        %v403 = vrot.slane %v398, %v402
        %v404 = vlaneseq
        %v405 = vshrl.u32 %v404, 7
        %v406 = vsub.s32 1, %v405
        %v407 = vrot.slane %v398, %v406
        %410 = vmatprep.subr.mxu0 %v397
        %411 = vmatpush1.msra.mxu0 %v396
        %412 = vmatprep.subr.mxu0 %v395
        %413 = vmatpush1.msra.mxu0 %v394
        %414 = vmatprep.subr.mxu0 %v393
        %415 = vmatpush1.msra.mxu0 %v392
        %416 = vmatprep.subr.mxu0 %v391
        %417 = vmatpush1.msra.mxu0 %v390
        %418 = vmatprep.subr.mxu0 %v389
        %419 = vmatpush1.msra.mxu0 %v388
        %420 = vmatprep.subr.mxu0 %v387
        %421 = vmatpush1.msra.mxu0 %v386
        %422 = vmatprep.subr.mxu0 %v385
        %423 = vmatpush1.msra.mxu0 %v384
        %424 = vmatprep.subr.mxu0 %v383
        %425 = vmatpush1.msra.mxu0 %v382
        %426 = vmatprep.subr.mxu0 %v381
        %427 = vmatpush1.msra.mxu0 %v380
        %428 = vmatprep.subr.mxu0 %v379
        %429 = vmatpush1.msra.mxu0 %v378
        %430 = vmatprep.subr.mxu0 %v377
        %431 = vmatpush1.msra.mxu0 %v376
        %432 = vmatprep.subr.mxu0 %v375
        %433 = vmatpush1.msra.mxu0 %v374
        %434 = vmatprep.subr.mxu0 %v373
        %435 = vmatpush1.msra.mxu0 %v372
        %436 = vmatprep.subr.mxu0 %v371
        %437 = vmatpush1.msra.mxu0 %v370
        %438 = vmatprep.subr.mxu0 %v369
        %439 = vmatpush1.msra.mxu0 %v368
        %440 = vmatprep.subr.mxu0 %v367
        %441 = vmatpush1.msra.mxu0 %v366
        %442 = vmatprep.subr.mxu0 0.0
        %443 = vmatpush2.msra.mxu0 0.0
        %444 = vmatprep.subr.mxu0 0.0
        %445 = vmatpush2.msra.mxu0 0.0
        %446 = vmatprep.subr.mxu0 0.0
        %447 = vmatpush2.msra.mxu0 0.0
        %448 = vmatprep.subr.mxu0 0.0
        %449 = vmatpush2.msra.mxu0 0.0
        %450 = vmatprep.subr.mxu0 0.0
        %451 = vmatpush2.msra.mxu0 0.0
        %452 = vmatprep.subr.mxu0 0.0
        %453 = vmatpush2.msra.mxu0 0.0
        %454 = vmatprep.subr.mxu0 0.0
        %455 = vmatpush2.msra.mxu0 0.0
        %456 = vmatprep.subr.mxu0 0.0
        %457 = vmatpush2.msra.mxu0 0.0
        %458 = vmatprep.subr.mxu0 0.0
        %459 = vmatpush2.msra.mxu0 0.0
        %460 = vmatprep.subr.mxu0 0.0
        %461 = vmatpush2.msra.mxu0 0.0
        %462 = vmatprep.subr.mxu0 0.0
        %463 = vmatpush2.msra.mxu0 0.0
        %464 = vmatprep.subr.mxu0 0.0
        %465 = vmatpush2.msra.mxu0 0.0
        %466 = vmatprep.subr.mxu0 0.0
        %467 = vmatpush2.msra.mxu0 0.0
        %468 = vmatprep.subr.mxu0 0.0
        %469 = vmatpush2.msra.mxu0 0.0
        %470 = vmatprep.subr.mxu0 0.0
        %471 = vmatpush2.msra.mxu0 0.0
        %472 = vmatprep.subr.mxu0 0.0
        %473 = vmatpush2.msra.mxu0 0.0
        %474 = vmatprep.mubr.f32.mxu0 0.0
        %475 = vmatmul.mubr.f32.gmra.mxu0 %v363
        %v476 = vpop.f32.mrf.mxu0
        %v477 = vadd.f32 %v403, %v476
        %v478 = vpop.f32.mrf.mxu0
        %v479 = vadd.f32 %v407, %v478
        %480 = vdwg.mxu0
        %v481 = vxor.u32 %v477, 2147483648
        %v482 = vmul.f32 %v481, 1.442695
        %v483 = vpow.pop %v482
        %v484 = vadd.f32 %v483, 1.0
        %v485 = vrcp.pop %v484
        %v486 = vmul.f32 1.0, %v485
        %v487 = vmax.f32 %v479, 0.0
        %v488 = vsub.f32 %v487, %v363
        %v489 = vmul.f32 %v486, %v488
        %v490 = vadd.f32 %v363, %v489
        %v491 = vld [vmem:[#allocation11] sm:$0xff]
        %v492 = vld [vmem:[#allocation11 + $0x8] sm:$0xff]
        %v493 = vld [vmem:[#allocation11 + $0x10] sm:$0xff]
        %v494 = vld [vmem:[#allocation11 + $0x18] sm:$0xff]
        %v495 = vld [vmem:[#allocation11 + $0x20] sm:$0xff]
        %v496 = vld [vmem:[#allocation11 + $0x28] sm:$0xff]
        %v497 = vld [vmem:[#allocation11 + $0x30] sm:$0xff]
        %v498 = vld [vmem:[#allocation11 + $0x38] sm:$0xff]
        %v499 = vld [vmem:[#allocation11 + $0x40] sm:$0xff]
        %v500 = vld [vmem:[#allocation11 + $0x48] sm:$0xff]
        %v501 = vld [vmem:[#allocation11 + $0x50] sm:$0xff]
        %v502 = vld [vmem:[#allocation11 + $0x58] sm:$0xff]
        %v503 = vld [vmem:[#allocation11 + $0x60] sm:$0xff]
        %v504 = vld [vmem:[#allocation11 + $0x68] sm:$0xff]
        %v505 = vld [vmem:[#allocation11 + $0x70] sm:$0xff]
        %v506 = vld [vmem:[#allocation11 + $0x78] sm:$0xff]
        %v507 = vld [vmem:[#allocation11 + $0x80] sm:$0xff]
        %v508 = vld [vmem:[#allocation11 + $0x88] sm:$0xff]
        %v509 = vld [vmem:[#allocation11 + $0x90] sm:$0xff]
        %v510 = vld [vmem:[#allocation11 + $0x98] sm:$0xff]
        %v511 = vld [vmem:[#allocation11 + $0xa0] sm:$0xff]
        %v512 = vld [vmem:[#allocation11 + $0xa8] sm:$0xff]
        %v513 = vld [vmem:[#allocation11 + $0xb0] sm:$0xff]
        %v514 = vld [vmem:[#allocation11 + $0xb8] sm:$0xff]
        %v515 = vld [vmem:[#allocation11 + $0xc0] sm:$0xff]
        %v516 = vld [vmem:[#allocation11 + $0xc8] sm:$0xff]
        %v517 = vld [vmem:[#allocation11 + $0xd0] sm:$0xff]
        %v518 = vld [vmem:[#allocation11 + $0xd8] sm:$0xff]
        %v519 = vld [vmem:[#allocation11 + $0xe0] sm:$0xff]
        %v520 = vld [vmem:[#allocation11 + $0xe8] sm:$0xff]
        %v521 = vld [vmem:[#allocation11 + $0xf0] sm:$0xff]
        %v522 = vld [vmem:[#allocation11 + $0xf8] sm:$0xff]
        %v523 = vld [vmem:[%s6] sm:$0x3]
        %v525 = vlaneseq
        %v526 = vshrl.u32 %v525, 7
        %v527 = vsub.s32 0, %v526
        %v528 = vrot.slane %v523, %v527
        %v529 = vlaneseq
        %v530 = vshrl.u32 %v529, 7
        %v531 = vsub.s32 1, %v530
        %v532 = vrot.slane %v523, %v531
        %535 = vmatprep.subr.mxu0 %v522
        %536 = vmatpush1.msra.mxu0 %v521
        %537 = vmatprep.subr.mxu0 %v520
        %538 = vmatpush1.msra.mxu0 %v519
        %539 = vmatprep.subr.mxu0 %v518
        %540 = vmatpush1.msra.mxu0 %v517
        %541 = vmatprep.subr.mxu0 %v516
        %542 = vmatpush1.msra.mxu0 %v515
        %543 = vmatprep.subr.mxu0 %v514
        %544 = vmatpush1.msra.mxu0 %v513
        %545 = vmatprep.subr.mxu0 %v512
        %546 = vmatpush1.msra.mxu0 %v511
        %547 = vmatprep.subr.mxu0 %v510
        %548 = vmatpush1.msra.mxu0 %v509
        %549 = vmatprep.subr.mxu0 %v508
        %550 = vmatpush1.msra.mxu0 %v507
        %551 = vmatprep.subr.mxu0 %v506
        %552 = vmatpush1.msra.mxu0 %v505
        %553 = vmatprep.subr.mxu0 %v504
        %554 = vmatpush1.msra.mxu0 %v503
        %555 = vmatprep.subr.mxu0 %v502
        %556 = vmatpush1.msra.mxu0 %v501
        %557 = vmatprep.subr.mxu0 %v500
        %558 = vmatpush1.msra.mxu0 %v499
        %559 = vmatprep.subr.mxu0 %v498
        %560 = vmatpush1.msra.mxu0 %v497
        %561 = vmatprep.subr.mxu0 %v496
        %562 = vmatpush1.msra.mxu0 %v495
        %563 = vmatprep.subr.mxu0 %v494
        %564 = vmatpush1.msra.mxu0 %v493
        %565 = vmatprep.subr.mxu0 %v492
        %566 = vmatpush1.msra.mxu0 %v491
        %567 = vmatprep.subr.mxu0 0.0
        %568 = vmatpush2.msra.mxu0 0.0
        %569 = vmatprep.subr.mxu0 0.0
        %570 = vmatpush2.msra.mxu0 0.0
        %571 = vmatprep.subr.mxu0 0.0
        %572 = vmatpush2.msra.mxu0 0.0
        %573 = vmatprep.subr.mxu0 0.0
        %574 = vmatpush2.msra.mxu0 0.0
        %575 = vmatprep.subr.mxu0 0.0
        %576 = vmatpush2.msra.mxu0 0.0
        %577 = vmatprep.subr.mxu0 0.0
        %578 = vmatpush2.msra.mxu0 0.0
        %579 = vmatprep.subr.mxu0 0.0
        %580 = vmatpush2.msra.mxu0 0.0
        %581 = vmatprep.subr.mxu0 0.0
        %582 = vmatpush2.msra.mxu0 0.0
        %583 = vmatprep.subr.mxu0 0.0
        %584 = vmatpush2.msra.mxu0 0.0
        %585 = vmatprep.subr.mxu0 0.0
        %586 = vmatpush2.msra.mxu0 0.0
        %587 = vmatprep.subr.mxu0 0.0
        %588 = vmatpush2.msra.mxu0 0.0
        %589 = vmatprep.subr.mxu0 0.0
        %590 = vmatpush2.msra.mxu0 0.0
        %591 = vmatprep.subr.mxu0 0.0
        %592 = vmatpush2.msra.mxu0 0.0
        %593 = vmatprep.subr.mxu0 0.0
        %594 = vmatpush2.msra.mxu0 0.0
        %595 = vmatprep.subr.mxu0 0.0
        %596 = vmatpush2.msra.mxu0 0.0
        %597 = vmatprep.subr.mxu0 0.0
        %598 = vmatpush2.msra.mxu0 0.0
        %599 = vmatprep.mubr.f32.mxu0 0.0
        %600 = vmatmul.mubr.f32.gmra.mxu0 %v490
        %v601 = vpop.f32.mrf.mxu0
        %v602 = vadd.f32 %v528, %v601
        %v603 = vpop.f32.mrf.mxu0
        %v604 = vadd.f32 %v532, %v603
        %605 = vdwg.mxu0
        %v606 = vxor.u32 %v602, 2147483648
        %v607 = vmul.f32 %v606, 1.442695
        %v608 = vpow.pop %v607
        %v609 = vadd.f32 %v608, 1.0
        %v610 = vrcp.pop %v609
        %v611 = vmul.f32 1.0, %v610
        %v612 = vmax.f32 %v604, 0.0
        %v613 = vsub.f32 %v612, %v490
        %v614 = vmul.f32 %v611, %v613
        %v615 = vadd.f32 %v490, %v614
        %616 = vst [vmem:[%s252] sm:$0xff] %v615
        %s617 = sand.u32 %s140, 1
        %s618 = scalar_lea.sflag [#allocation8], %s617
        %s619 = sand.u32 %s140, 1
        %s620 = smul.addr %s619, 8
        %s621 = scalar_lea.vmem [#allocation12], %s620
        // Predicated region
        $region64: #{tpu_custom_call.1} parent=39 // pred_check
          %p622 = pneg %p150
        $region65: #{tpu_custom_call.1} parent=39 // pred_check_branch
          %624 = sbr.rel (%p622) target = $region67
        $region66: #{tpu_custom_call.1} parent=39 // pred_region
          %s626 = ssub.s32 128, 128
          %627 = vsyncadd %s618, %s626
          %s628 = smul.addr %s27, 128
          %s629 = scalar_lea.hbm %s7, %s628
          %s631 = sshll.u32 %s621, 4
          %s632 = int_to_ptr.vmem [resolvable:$true] %s631
          %634 = dma.vmem_to_hbm [thread:$0]  %s632, 128, %s629, %s618
        $region67: #{tpu_custom_call.1} parent=39 // pred_fallthru
          _
      $region40: #{tpu_custom_call.1} parent=5 // pred_fallthru
        _
      %p635 = scmp.le.s32.totalorder 2, %s22
      // Predicated region
      $region68: #{tpu_custom_call.1} parent=5 // pred_check
        %p636 = pneg %p635
      $region69: #{tpu_custom_call.1} parent=5 // pred_check_branch
        %638 = sbr.rel (%p636) target = $region71
      $region70: #{tpu_custom_call.1} parent=5 // pred_region
        %s639 = ssub.s32 %s22, 2
        // Predicated region
        $region72: #{tpu_custom_call.1} parent=70 // pred_check
          %p640 = pneg %p156
        $region73: #{tpu_custom_call.1} parent=70 // pred_check_branch
          %642 = sbr.rel (%p640) target = $region75
        $region74: #{tpu_custom_call.1} parent=70 // pred_region
          %s643 = sand.u32 %s141, 1
          %s644 = scalar_lea.sflag [#allocation8], %s643
          %s645 = sand.u32 %s141, 1
          %s646 = smul.addr %s645, 8
          %s647 = scalar_lea.vmem [#allocation12], %s646
          %648 = dma.done %s644, 128
        $region75: #{tpu_custom_call.1} parent=70 // pred_fallthru
          _
      $region71: #{tpu_custom_call.1} parent=5 // pred_fallthru
        _
    $region6: #{tpu_custom_call.1} parent=1 // loop_footer
      %s26 = sadd.s32 1, %s22
    $region7: #{tpu_custom_call.1} parent=1 // loop_footer_branch
      %21 = sbr.rel target = $region3
    $region8: #{tpu_custom_call.1} parent=1 // loop_exit
      _
    %649 = vsyncpa [#allocation7], 1
    %s650 = scalar_lea.sflag [#allocation7], 1
    %651 = vsyncpa %s650, 1
    %652 = vsyncpa [#allocation10], 1
    %653 = vsyncpa [#allocation8], 1
    %s654 = scalar_lea.sflag [#allocation8], 1
    %655 = vsyncpa %s654, 1
  %656 = vsyncmov [#allocation3]
  %s657 = vpop.sfrf %656
  %p658 = scmp.eq.s32.totalorder %s657, 0
  %p659 = pneg %p658
  %661 = shalt.err (%p659)

</llo_original>
